<compile_context>
chip_gen: v6e
topology: v6e:2x2x1
jax: 0.10.0
libtpu: 0.0.40
codegen_flags: <defaults>
</compile_context>

<pallas_src>
import functools

import jax
import jax.numpy as jnp
from jax.experimental import pallas as pl
from jax.experimental.pallas import tpu as pltpu

HIDDEN = 256                   # hidden width of l1/l2 (nn.Linear(., 256))
A_PAD = 128                    # lane-dense padded action width (action_dim <= 128)
B_PACK = 2 * HIDDEN + A_PAD    # packed bias buffer width = 640


def _round_up(x, m):
    return ((x + m - 1) // m) * m


def _device_kind():
    try:
        return jax.devices()[0].device_kind.lower()
    except Exception:
        return ""


def _prefers_bf16_path():
    # bf16 VPU/EUP + bf16-friendly writeback: v6e / v7x. Keep f32 elementwise
    # and f32 output on v5e (and older), which has no bf16 VALU.
    kind = _device_kind()
    return ("v6" in kind) or ("v7" in kind) or ("7x" in kind)


def _choose_tile(B, tile_b, split_threshold=256):
    """Adaptive batch tile: multiple of 16, minimal last-tile padding,
    >=2 grid steps for large B (lights up both v7x TensorCores)."""
    n = max(1, -(-B // tile_b))          # grid steps at the requested tile size
    if n == 1 and B >= split_threshold:
        n = 2
    tb = _round_up(-(-B // n), 16)       # bf16 packs 16 rows per sublane tile
    return max(tb, 16)


# --------------------------------- kernel ------------------------------------

def actor_kernel(x_ref, w1_ref, w2_ref, w3_ref, b_ref, o_ref, *, max_action, ew_bf16):
    # x_ref: [TB, S] f32   w1: [S,256] bf16   w2: [256,256] bf16
    # w3: [256,128] bf16 (zero-padded past action_dim)   b: [1,640] f32
    # o_ref: [TB, 128] f32 or bf16 (lane-dense; sliced to action_dim in wrapper)
    x = x_ref[...].astype(jnp.bfloat16)

    h = jnp.dot(x, w1_ref[...], preferred_element_type=jnp.float32)
    if ew_bf16:
        h = jnp.maximum(h.astype(jnp.bfloat16)
                        + b_ref[:, 0:HIDDEN].astype(jnp.bfloat16), 0.0)
    else:
        h = jnp.maximum(h + b_ref[:, 0:HIDDEN], 0.0).astype(jnp.bfloat16)

    h = jnp.dot(h, w2_ref[...], preferred_element_type=jnp.float32)
    if ew_bf16:
        h = jnp.maximum(h.astype(jnp.bfloat16)
                        + b_ref[:, HIDDEN:2 * HIDDEN].astype(jnp.bfloat16), 0.0)
    else:
        h = jnp.maximum(h + b_ref[:, HIDDEN:2 * HIDDEN], 0.0).astype(jnp.bfloat16)

    h = jnp.dot(h, w3_ref[...], preferred_element_type=jnp.float32)
    h = h + b_ref[:, 2 * HIDDEN:2 * HIDDEN + A_PAD]       # final bias + tanh in f32

    o_ref[...] = (max_action * jnp.tanh(h)).astype(o_ref.dtype)


# -------------------------------- wrapper -------------------------------------

def actor_forward(state, prepared_params, action_dim, max_action, *,
                  tile_b=1024, out_dtype=None, ew_bf16=None, return_slab=False):
    """state: [B, state_dim] f32. Returns [B, action_dim] (f32 on v5e, bf16 on
    v6e/v7x unless out_dtype is given), or the raw [Bp, A_PAD] slab if
    return_slab=True (lets the consumer slice lazily)."""
    w1, w2, w3p, b_packed = prepared_params
    B, S = state.shape

    if ew_bf16 is None:
        ew_bf16 = _prefers_bf16_path()
    if out_dtype is None:
        out_dtype = jnp.bfloat16 if _prefers_bf16_path() else jnp.float32

    TB = _choose_tile(B, tile_b)
    Bp = _round_up(B, TB)
    if Bp != B:                                   # skip the pad copy when aligned
        state = jnp.pad(state, ((0, Bp - B), (0, 0)))

    flops = 2 * Bp * (S * HIDDEN + HIDDEN * HIDDEN + HIDDEN * A_PAD)
    bytes_accessed = (int(w1.size) * 2 + int(w2.size) * 2 + int(w3p.size) * 2
                      + int(b_packed.size) * 4
                      + Bp * S * 4 + Bp * A_PAD * jnp.dtype(out_dtype).itemsize)
    cost = pl.CostEstimate(flops=flops, transcendentals=Bp * A_PAD,
                           bytes_accessed=bytes_accessed)

    kernel = functools.partial(actor_kernel, max_action=float(max_action),
                               ew_bf16=bool(ew_bf16))
    out = pl.pallas_call(
        kernel,
        out_shape=jax.ShapeDtypeStruct((Bp, A_PAD), out_dtype),
        grid=(Bp // TB,),
        in_specs=[
            pl.BlockSpec((TB, S), lambda i: (i, 0)),              # state tile
            pl.BlockSpec((S, HIDDEN), lambda i: (0, 0)),          # w1 (resident)
            pl.BlockSpec((HIDDEN, HIDDEN), lambda i: (0, 0)),     # w2 (resident)
            pl.BlockSpec((HIDDEN, A_PAD), lambda i: (0, 0)),      # w3 (resident)
            pl.BlockSpec((1, B_PACK), lambda i: (0, 0)),          # packed biases
        ],
        out_specs=pl.BlockSpec((TB, A_PAD), lambda i: (i, 0)),
        compiler_params=pltpu.CompilerParams(
            dimension_semantics=("parallel",)),                   # v7x: 2 TCs
        cost_estimate=cost,
    )(state, w1, w2, w3p, b_packed)

    if return_slab:
        return out                                # [Bp, A_PAD] lane-dense slab
    return out[:B, :action_dim]


# ----------------------------- parameter helpers -----------------------------

def init_linear(key, in_dim, out_dim):
    # Mirrors PyTorch nn.Linear default init: U(-1/sqrt(in), 1/sqrt(in)).
    kw, kb = jax.random.split(key)
    bound = 1.0 / jnp.sqrt(jnp.float32(in_dim))
    w = jax.random.uniform(kw, (in_dim, out_dim), jnp.float32, -bound, bound)
    b = jax.random.uniform(kb, (1, out_dim), jnp.float32, -bound, bound)
    return w, b


def make_actor_params(key, state_dim, action_dim, hidden=HIDDEN):
    k1, k2, k3 = jax.random.split(key, 3)
    w1, b1 = init_linear(k1, state_dim, hidden)
    w2, b2 = init_linear(k2, hidden, hidden)
    w3, b3 = init_linear(k3, hidden, action_dim)
    return (w1, b1, w2, b2, w3, b3)


def prepare_actor_params(params):
    """One-time packing for the kernel: bf16 weights, padded w3/b3, packed bias."""
    w1, b1, w2, b2, w3, b3 = params
    action_dim = w3.shape[1]
    assert action_dim <= A_PAD
    w1b = w1.astype(jnp.bfloat16)
    w2b = w2.astype(jnp.bfloat16)
    w3p = jnp.zeros((HIDDEN, A_PAD), jnp.bfloat16)
    w3p = w3p.at[:, :action_dim].set(w3.astype(jnp.bfloat16))
    b3p = jnp.zeros((1, A_PAD), jnp.float32).at[:, :action_dim].set(b3)
    b_packed = jnp.concatenate([b1, b2, b3p], axis=1)  # [1, 640] f32
    return (w1b, w2b, w3p, b_packed), action_dim


# -------------------------------- references ---------------------------------

def actor_reference_f32(state, params, max_action):
    w1, b1, w2, b2, w3, b3 = params
    a = jnp.maximum(state @ w1 + b1, 0.0)
    a = jnp.maximum(a @ w2 + b2, 0.0)
    return max_action * jnp.tanh(a @ w3 + b3)


def actor_reference_kernelpath(state, prepared, action_dim, max_action, ew_bf16):
    # Mirrors the kernel numerics (bf16 MXU inputs, f32 accumulation, optional
    # bf16 elementwise), but keeps the final output in f32.
    w1, w2, w3p, b_packed = prepared
    b1 = b_packed[:, :HIDDEN]
    b2 = b_packed[:, HIDDEN:2 * HIDDEN]
    b3 = b_packed[:, 2 * HIDDEN:2 * HIDDEN + A_PAD]

    def act(hf32, bf32):
        if ew_bf16:
            return jnp.maximum(hf32.astype(jnp.bfloat16) + bf32.astype(jnp.bfloat16), 0.0)
        return jnp.maximum(hf32 + bf32, 0.0).astype(jnp.bfloat16)

    h = jnp.dot(state.astype(jnp.bfloat16), w1, preferred_element_type=jnp.float32)
    h = act(h, b1)
    h = jnp.dot(h, w2, preferred_element_type=jnp.float32)
    h = act(h, b2)
    h = jnp.dot(h, w3p, preferred_element_type=jnp.float32)
    out = max_action * jnp.tanh(h + b3)
    return out[:, :action_dim]


if __name__ == "__main__":
    key = jax.random.PRNGKey(0)
    k_params, k_state = jax.random.split(key)

    batch = 2
    state_dim = 16
    action_dim = 4
    max_action = 1.0

    raw_params = make_actor_params(k_params, state_dim, action_dim)
    prepared, a_dim = prepare_actor_params(raw_params)
    state = jax.random.normal(k_state, (batch, state_dim), jnp.float32)

    out = actor_forward(state, prepared, a_dim, max_action)
    out = jax.block_until_ready(out)
    assert out.shape == (batch, action_dim)
    out_f32 = out.astype(jnp.float32)

    ew = _prefers_bf16_path()
    # Tight check vs. the same-precision (kernel-path) reference.
    ref_kp = actor_reference_kernelpath(state, prepared, a_dim, max_action, ew)
    assert jnp.allclose(out_f32, ref_kp, atol=1e-2, rtol=1e-2)

    # Looser check vs. the pure-f32 PyTorch-equivalent reference.
    ref_f32 = actor_reference_f32(state, raw_params, max_action)
    assert jnp.allclose(out_f32, ref_f32, atol=3e-2, rtol=3e-2)

    # Exercise the adaptive-tile / multi-grid-step / batch-padding path.
    big_state = jax.random.normal(k_state, (300, state_dim), jnp.float32)
    out_big = actor_forward(big_state, prepared, a_dim, max_action)
    out_big = jax.block_until_ready(out_big)
    assert out_big.shape == (300, a_dim)
    ref_big = actor_reference_kernelpath(big_state, prepared, a_dim, max_action, ew)
    assert jnp.allclose(out_big.astype(jnp.float32), ref_big, atol=1e-2, rtol=1e-2)

    print("KERNEL_OK")
</pallas_src>

<mosaic_0001>
module attributes {stable_mosaic.version = 11 : i64} {
  func.func @actor_kernel(%arg0: i32, %arg1: memref<16x16xf32, #tpu.memory_space<vmem>>, %arg2: memref<16x256xbf16, #tpu.memory_space<vmem>>, %arg3: memref<256x256xbf16, #tpu.memory_space<vmem>>, %arg4: memref<256x128xbf16, #tpu.memory_space<vmem>>, %arg5: memref<1x640xf32, #tpu.memory_space<vmem>>, %arg6: memref<16x128xf32, #tpu.memory_space<vmem>>) attributes {dimension_semantics = [#tpu.dimension_semantics<parallel>], iteration_bounds = array<i64: 1>, scalar_prefetch = 0 : i64, scratch_operands = 0 : i64, tpu.core_type = #tpu.core_type<tc>, window_params = [{transform_indices = @transform_0, window_bounds = array<i64: 16, 16>}, {pipeline_mode = #tpu.pipeline_mode<synchronous>, transform_indices = @transform_1, window_bounds = array<i64: 16, 256>}, {pipeline_mode = #tpu.pipeline_mode<synchronous>, transform_indices = @transform_2, window_bounds = array<i64: 256, 256>}, {pipeline_mode = #tpu.pipeline_mode<synchronous>, transform_indices = @transform_3, window_bounds = array<i64: 256, 128>}, {pipeline_mode = #tpu.pipeline_mode<synchronous>, transform_indices = @transform_4, window_bounds = array<i64: 1, 640>}, {transform_indices = @transform_5, window_bounds = array<i64: 16, 128>}]} {
    %c0 = arith.constant 0 : index
    %c0_0 = arith.constant 0 : index
    %0 = vector.load %arg1[%c0, %c0_0] : memref<16x16xf32, #tpu.memory_space<vmem>>, vector<16x16xf32>
    %1 = arith.truncf %0 : vector<16x16xf32> to vector<16x16xbf16>
    %c0_1 = arith.constant 0 : index
    %c0_2 = arith.constant 0 : index
    %2 = vector.load %arg2[%c0_1, %c0_2] : memref<16x256xbf16, #tpu.memory_space<vmem>>, vector<16x256xbf16>
    %cst = arith.constant dense<0.000000e+00> : vector<16x256xf32>
    %3 = tpu.matmul %1, %2, %cst {dimension_numbers = #tpu.dot_dimension_numbers<[1], [0], [0], [1], [0, 0, 1, 1], [], []>} : vector<16x16xbf16>, vector<16x256xbf16>, vector<16x256xf32> -> vector<16x256xf32>
    %c0_3 = arith.constant 0 : index
    %c0_4 = arith.constant 0 : index
    %4 = vector.load %arg5[%c0_3, %c0_4] : memref<1x640xf32, #tpu.memory_space<vmem>>, vector<1x256xf32>
    %5 = vector.broadcast %4 : vector<1x256xf32> to vector<16x256xf32>
    %6 = arith.addf %3, %5 : vector<16x256xf32>
    %cst_5 = arith.constant 0.000000e+00 : f32
    %7 = vector.broadcast %cst_5 : f32 to vector<16x256xf32>
    %8 = arith.maximumf %6, %7 : vector<16x256xf32>
    %9 = arith.truncf %8 : vector<16x256xf32> to vector<16x256xbf16>
    %c0_6 = arith.constant 0 : index
    %c0_7 = arith.constant 0 : index
    %10 = vector.load %arg3[%c0_6, %c0_7] : memref<256x256xbf16, #tpu.memory_space<vmem>>, vector<256x256xbf16>
    %cst_8 = arith.constant dense<0.000000e+00> : vector<16x256xf32>
    %11 = tpu.matmul %9, %10, %cst_8 {dimension_numbers = #tpu.dot_dimension_numbers<[1], [0], [0], [1], [0, 0, 1, 1], [], []>} : vector<16x256xbf16>, vector<256x256xbf16>, vector<16x256xf32> -> vector<16x256xf32>
    %c0_9 = arith.constant 0 : index
    %c256 = arith.constant 256 : index
    %12 = vector.load %arg5[%c0_9, %c256] : memref<1x640xf32, #tpu.memory_space<vmem>>, vector<1x256xf32>
    %13 = vector.broadcast %12 : vector<1x256xf32> to vector<16x256xf32>
    %14 = arith.addf %11, %13 : vector<16x256xf32>
    %cst_10 = arith.constant 0.000000e+00 : f32
    %15 = vector.broadcast %cst_10 : f32 to vector<16x256xf32>
    %16 = arith.maximumf %14, %15 : vector<16x256xf32>
    %17 = arith.truncf %16 : vector<16x256xf32> to vector<16x256xbf16>
    %c0_11 = arith.constant 0 : index
    %c0_12 = arith.constant 0 : index
    %18 = vector.load %arg4[%c0_11, %c0_12] : memref<256x128xbf16, #tpu.memory_space<vmem>>, vector<256x128xbf16>
    %cst_13 = arith.constant dense<0.000000e+00> : vector<16x128xf32>
    %19 = tpu.matmul %17, %18, %cst_13 {dimension_numbers = #tpu.dot_dimension_numbers<[1], [0], [0], [1], [0, 0, 1, 1], [], []>} : vector<16x256xbf16>, vector<256x128xbf16>, vector<16x128xf32> -> vector<16x128xf32>
    %c0_14 = arith.constant 0 : index
    %c512 = arith.constant 512 : index
    %20 = vector.load %arg5[%c0_14, %c512] : memref<1x640xf32, #tpu.memory_space<vmem>>, vector<1x128xf32>
    %21 = vector.broadcast %20 : vector<1x128xf32> to vector<16x128xf32>
    %22 = arith.addf %19, %21 : vector<16x128xf32>
    %23 = math.tanh %22 : vector<16x128xf32>
    %cst_15 = arith.constant 1.000000e+00 : f32
    %24 = vector.broadcast %cst_15 : f32 to vector<16x128xf32>
    %25 = arith.mulf %24, %23 : vector<16x128xf32>
    %c0_16 = arith.constant 0 : index
    %c0_17 = arith.constant 0 : index
    %26 = vector.load %arg6[%c0_16, %c0_17] : memref<16x128xf32, #tpu.memory_space<vmem>>, vector<16x128xf32>
    tpu.vector_store %arg6[%c0_16, %c0_17], %25 {strides = array<i32>} : memref<16x128xf32, #tpu.memory_space<vmem>>, vector<16x128xf32>,
    return
  }
  func.func @transform_0(%arg0: i32) -> (i32, i32) {
    %c0_i32 = arith.constant 0 : i32
    %c0_i32_0 = arith.constant 0 : i32
    return %arg0, %c0_i32 : i32, i32
  }
  func.func @transform_1(%arg0: i32) -> (i32, i32) {
    %c0_i32 = arith.constant 0 : i32
    %c0_i32_0 = arith.constant 0 : i32
    %c0_i32_1 = arith.constant 0 : i32
    return %c0_i32, %c0_i32_0 : i32, i32
  }
  func.func @transform_2(%arg0: i32) -> (i32, i32) {
    %c0_i32 = arith.constant 0 : i32
    %c0_i32_0 = arith.constant 0 : i32
    %c0_i32_1 = arith.constant 0 : i32
    return %c0_i32, %c0_i32_0 : i32, i32
  }
  func.func @transform_3(%arg0: i32) -> (i32, i32) {
    %c0_i32 = arith.constant 0 : i32
    %c0_i32_0 = arith.constant 0 : i32
    %c0_i32_1 = arith.constant 0 : i32
    return %c0_i32, %c0_i32_0 : i32, i32
  }
  func.func @transform_4(%arg0: i32) -> (i32, i32) {
    %c0_i32 = arith.constant 0 : i32
    %c0_i32_0 = arith.constant 0 : i32
    %c0_i32_1 = arith.constant 0 : i32
    return %c0_i32, %c0_i32_0 : i32, i32
  }
  func.func @transform_5(%arg0: i32) -> (i32, i32) {
    %c0_i32 = arith.constant 0 : i32
    %c0_i32_0 = arith.constant 0 : i32
    return %arg0, %c0_i32 : i32, i32
  }
}

</mosaic_0001>

<llo_original>
// kernel: tpu_custom_call.1
$region0: #{tpu_custom_call.1}
  #allocation0 [shape = 'u32[]', space=smem, size = 0x4, offset = 0x4, fixed_abs, tag = 'smem constant byte address 0x4 - core index']
  #allocation1 [shape = 'u32[144,128]{1,0:T(1,128)}', space=vmem, size = 0x12000, scoped, tag = 'internal scratch']
  %s0 = inlined_call_operand.hbm [shape: f32[16,16], index: 0, kind: input, shape index: {}]
  %s1 = inlined_call_operand.hbm [shape: bf16[16,256], index: 1, kind: input, shape index: {}]
  %s2 = inlined_call_operand.hbm [shape: bf16[256,256], index: 2, kind: input, shape index: {}]
  %s3 = inlined_call_operand.hbm [shape: bf16[256,128], index: 3, kind: input, shape index: {}]
  %s4 = inlined_call_operand.vmem [shape: f32[1,640], index: 4, kind: input, shape index: {}]
  %s5 = inlined_call_operand.hbm [shape: f32[16,128], index: 5, kind: output, shape index: {}]
  %s6 = sld [smem:[#allocation0]]
  $region46: #{tpu_custom_call.1} parent=0
    _
  %s8 = ssub.s32 1, %s6
  %s9 = scalar_select 0, %s8, %s6
  $region1: #{tpu_custom_call.1} parent=0
    #allocation2 [shape = 'u8[8192]{0}', space=vmem, size = 0x2000, scoped, tag = 'input window, operand 0, single buffered']
    #allocation3 [shape = 's32[1]{0}', space=sflag, size = 0x4, scoped, tag = 'scoped memory for tpu_custom_call.1']
    #allocation4 [shape = 's32[1]{0}', space=sflag, size = 0x4, scoped, tag = 'scoped memory for tpu_custom_call.1']
    #allocation5 [shape = 'u8[8192]{0}', space=vmem, size = 0x2000, scoped, tag = 'input window, operand 1, single buffered']
    #allocation6 [shape = 's32[1]{0}', space=sflag, size = 0x4, scoped, tag = 'scoped memory for tpu_custom_call.1']
    #allocation7 [shape = 'u8[131072]{0}', space=vmem, size = 0x20000, scoped, tag = 'input window, operand 2, single buffered']
    #allocation8 [shape = 'u8[65536]{0}', space=vmem, size = 0x10000, scoped, tag = 'input window, operand 3, single buffered']
    #allocation9 [shape = 's32[1]{0}', space=sflag, size = 0x4, scoped, tag = 'scoped memory for tpu_custom_call.1']
    #allocation10 [shape = 'u8[8192]{0}', space=vmem, size = 0x2000, scoped, tag = 'output window, operand 0, single buffered']
    %10 = vsyncpa [#allocation3], 0
    %11 = vsyncpa [#allocation6], 0
    %12 = vsyncpa [#allocation9], 0
    %13 = vsyncpa [#allocation4], 0
    // Predicated region
    $region2: #{tpu_custom_call.1} parent=1 // pred_check
      _
    $region3: #{tpu_custom_call.1} parent=1 // pred_check_branch
      %15 = sbr.rel (0) target = $region5
    $region4: #{tpu_custom_call.1} parent=1 // pred_region
      %s17 = ssub.s32 256, 256
      %18 = vsyncadd [#allocation3], %s17
      %s19 = sshll.u32 [#allocation2], 4
      %s20 = int_to_ptr.vmem [resolvable:$true] %s19
      %25 = dma.hbm_to_vmem [thread:$0]  %s0, 256, %s20, [#allocation3], 128, 128, 8
    $region5: #{tpu_custom_call.1} parent=1 // pred_fallthru
      _
    // Predicated region
    $region6: #{tpu_custom_call.1} parent=1 // pred_check
      _
    $region7: #{tpu_custom_call.1} parent=1 // pred_check_branch
      %27 = sbr.rel (0) target = $region9
    $region8: #{tpu_custom_call.1} parent=1 // pred_region
      %s29 = ssub.s32 256, 256
      %30 = vsyncadd [#allocation6], %s29
      %s31 = sshll.u32 [#allocation5], 4
      %s32 = int_to_ptr.vmem [resolvable:$true] %s31
      %37 = dma.hbm_to_vmem [thread:$0]  %s1, 256, %s32, [#allocation6], 128, 128, 8
    $region9: #{tpu_custom_call.1} parent=1 // pred_fallthru
      _
    // Predicated region
    $region10: #{tpu_custom_call.1} parent=1 // pred_check
      _
    $region11: #{tpu_custom_call.1} parent=1 // pred_check_branch
      %39 = sbr.rel (0) target = $region13
    $region12: #{tpu_custom_call.1} parent=1 // pred_region
      %s41 = ssub.s32 4096, 4096
      %42 = vsyncadd [#allocation6], %s41
      %s43 = sshll.u32 [#allocation7], 4
      %s44 = int_to_ptr.vmem [resolvable:$true] %s43
      %49 = dma.hbm_to_vmem [thread:$0]  %s2, 4096, %s44, [#allocation6], 128, 128, 8
    $region13: #{tpu_custom_call.1} parent=1 // pred_fallthru
      _
    // Predicated region
    $region14: #{tpu_custom_call.1} parent=1 // pred_check
      _
    $region15: #{tpu_custom_call.1} parent=1 // pred_check_branch
      %51 = sbr.rel (0) target = $region17
    $region16: #{tpu_custom_call.1} parent=1 // pred_region
      %s53 = ssub.s32 2048, 2048
      %54 = vsyncadd [#allocation9], %s53
      %s55 = sshll.u32 [#allocation8], 4
      %s56 = int_to_ptr.vmem [resolvable:$true] %s55
      %61 = dma.hbm_to_vmem [thread:$0]  %s3, 2048, %s56, [#allocation9], 64, 64, 4
    $region17: #{tpu_custom_call.1} parent=1 // pred_fallthru
      _
    // Predicated region
    $region18: #{tpu_custom_call.1} parent=1 // pred_check
      _
    $region19: #{tpu_custom_call.1} parent=1 // pred_check_branch
      %63 = sbr.rel (0) target = $region21
    $region20: #{tpu_custom_call.1} parent=1 // pred_region
      _
    $region21: #{tpu_custom_call.1} parent=1 // pred_fallthru
      _
    // Predicated region
    $region22: #{tpu_custom_call.1} parent=1 // pred_check
      _
    $region23: #{tpu_custom_call.1} parent=1 // pred_check_branch
      %65 = sbr.rel (0) target = $region25
    $region24: #{tpu_custom_call.1} parent=1 // pred_region
      %66 = dma.done [#allocation3], 256
    $region25: #{tpu_custom_call.1} parent=1 // pred_fallthru
      _
    // Predicated region
    $region26: #{tpu_custom_call.1} parent=1 // pred_check
      _
    $region27: #{tpu_custom_call.1} parent=1 // pred_check_branch
      %68 = sbr.rel (0) target = $region29
    $region28: #{tpu_custom_call.1} parent=1 // pred_region
      %69 = dma.done [#allocation6], 256
    $region29: #{tpu_custom_call.1} parent=1 // pred_fallthru
      _
    // Predicated region
    $region30: #{tpu_custom_call.1} parent=1 // pred_check
      _
    $region31: #{tpu_custom_call.1} parent=1 // pred_check_branch
      %71 = sbr.rel (0) target = $region33
    $region32: #{tpu_custom_call.1} parent=1 // pred_region
      %72 = dma.done [#allocation6], 4096
    $region33: #{tpu_custom_call.1} parent=1 // pred_fallthru
      _
    // Predicated region
    $region34: #{tpu_custom_call.1} parent=1 // pred_check
      _
    $region35: #{tpu_custom_call.1} parent=1 // pred_check_branch
      %74 = sbr.rel (0) target = $region37
    $region36: #{tpu_custom_call.1} parent=1 // pred_region
      %75 = dma.done [#allocation9], 2048
    $region37: #{tpu_custom_call.1} parent=1 // pred_fallthru
      _
    %v77 = vld [vmem:[#allocation2] sm:$0xff]
    %v78 = vld [vmem:[#allocation2 + $0x8] sm:$0xff]
    %v79 = vpack.c.bf16 %v78, %v77
    %v80 = vld [vmem:[#allocation5] sm:$0xff]
    %v81 = vld [vmem:[#allocation5 + $0x8] sm:$0xff]
    %v82 = vld [vmem:[%s4] sm:$0x3]
    %v84 = vlaneseq
    %v85 = vshrl.u32 %v84, 7
    %v86 = vsub.s32 0, %v85
    %v87 = vrot.slane %v82, %v86
    %v88 = vlaneseq
    %v89 = vshrl.u32 %v88, 7
    %v90 = vsub.s32 1, %v89
    %v91 = vrot.slane %v82, %v90
    %v96 = vunpack.c.l.b16 %v80
    %v97 = vunpack.c.h.b16 %v80
    %v98 = vunpack.c.l.b16 %v81
    %v99 = vunpack.c.h.b16 %v81
    %v100 = vpack.c.b16 %v98, %v96
    %v101 = vpack.c.b16 %v99, %v97
    %vm104 = vcmask 130048
    %v106 = vsel %vm104, %v79, 0
    %108 = vmatprep.subr.bf16.mxu0 0
    %109 = vmatpush1.bf16.msra.mxu0 0
    %110 = vmatprep.subr.bf16.mxu0 0
    %111 = vmatpush1.bf16.msra.mxu0 0
    %112 = vmatprep.subr.bf16.mxu0 0
    %113 = vmatpush1.bf16.msra.mxu0 0
    %114 = vmatprep.subr.bf16.mxu0 0
    %115 = vmatpush1.bf16.msra.mxu0 0
    %116 = vmatprep.subr.bf16.mxu0 0
    %117 = vmatpush1.bf16.msra.mxu0 0
    %118 = vmatprep.subr.bf16.mxu0 0
    %119 = vmatpush1.bf16.msra.mxu0 0
    %120 = vmatprep.subr.bf16.mxu0 0
    %121 = vmatpush1.bf16.msra.mxu0 0
    %122 = vmatprep.subr.bf16.mxu0 %v101
    %123 = vmatpush1.bf16.msra.mxu0 %v100
    %124 = vmatprep.subr.bf16.mxu0 0
    %125 = vmatpush2.bf16.msra.mxu0 0
    %126 = vmatprep.subr.bf16.mxu0 0
    %127 = vmatpush2.bf16.msra.mxu0 0
    %128 = vmatprep.subr.bf16.mxu0 0
    %129 = vmatpush2.bf16.msra.mxu0 0
    %130 = vmatprep.subr.bf16.mxu0 0
    %131 = vmatpush2.bf16.msra.mxu0 0
    %132 = vmatprep.subr.bf16.mxu0 0
    %133 = vmatpush2.bf16.msra.mxu0 0
    %134 = vmatprep.subr.bf16.mxu0 0
    %135 = vmatpush2.bf16.msra.mxu0 0
    %136 = vmatprep.subr.bf16.mxu0 0
    %137 = vmatpush2.bf16.msra.mxu0 0
    %138 = vmatprep.subr.bf16.mxu0 0
    %139 = vmatpush2.bf16.msra.mxu0 0
    %140 = vmatprep.mubr.bf16.mxu0 0
    %141 = vmatmul.mubr.bf16.gmra.mxu0 %v106
    %v142 = vpop.f32.mrf.mxu0
    %v143 = vadd.f32 %v87, %v142
    %v144 = vpop.f32.mrf.mxu0
    %v145 = vadd.f32 %v91, %v144
    %v146 = vpop.f32.mrf.mxu0
    %v147 = vadd.f32 %v87, %v146
    %v148 = vpop.f32.mrf.mxu0
    %v149 = vadd.f32 %v91, %v148
    %150 = vdwg.mxu0
    %v151 = vmax.f32 %v143, 0.0
    %v152 = vmax.f32 %v145, 0.0
    %v153 = vmax.f32 %v147, 0.0
    %v154 = vmax.f32 %v149, 0.0
    %v155 = vpack.c.bf16 %v153, %v151
    %v156 = vpack.c.bf16 %v154, %v152
    %v157 = vld [vmem:[#allocation7] sm:$0xff]
    %v158 = vld [vmem:[#allocation7 + $0x8] sm:$0xff]
    %v159 = vld [vmem:[#allocation7 + $0x10] sm:$0xff]
    %v160 = vld [vmem:[#allocation7 + $0x18] sm:$0xff]
    %v161 = vld [vmem:[#allocation7 + $0x20] sm:$0xff]
    %v162 = vld [vmem:[#allocation7 + $0x28] sm:$0xff]
    %v163 = vld [vmem:[#allocation7 + $0x30] sm:$0xff]
    %v164 = vld [vmem:[#allocation7 + $0x38] sm:$0xff]
    %v165 = vld [vmem:[#allocation7 + $0x40] sm:$0xff]
    %v166 = vld [vmem:[#allocation7 + $0x48] sm:$0xff]
    %v167 = vld [vmem:[#allocation7 + $0x50] sm:$0xff]
    %v168 = vld [vmem:[#allocation7 + $0x58] sm:$0xff]
    %v169 = vld [vmem:[#allocation7 + $0x60] sm:$0xff]
    %v170 = vld [vmem:[#allocation7 + $0x68] sm:$0xff]
    %v171 = vld [vmem:[#allocation7 + $0x70] sm:$0xff]
    %v172 = vld [vmem:[#allocation7 + $0x78] sm:$0xff]
    %v173 = vld [vmem:[#allocation7 + $0x80] sm:$0xff]
    %v174 = vld [vmem:[#allocation7 + $0x88] sm:$0xff]
    %v175 = vld [vmem:[#allocation7 + $0x90] sm:$0xff]
    %v176 = vld [vmem:[#allocation7 + $0x98] sm:$0xff]
    %v177 = vld [vmem:[#allocation7 + $0xa0] sm:$0xff]
    %v178 = vld [vmem:[#allocation7 + $0xa8] sm:$0xff]
    %v179 = vld [vmem:[#allocation7 + $0xb0] sm:$0xff]
    %v180 = vld [vmem:[#allocation7 + $0xb8] sm:$0xff]
    %v181 = vld [vmem:[#allocation7 + $0xc0] sm:$0xff]
    %v182 = vld [vmem:[#allocation7 + $0xc8] sm:$0xff]
    %v183 = vld [vmem:[#allocation7 + $0xd0] sm:$0xff]
    %v184 = vld [vmem:[#allocation7 + $0xd8] sm:$0xff]
    %v185 = vld [vmem:[#allocation7 + $0xe0] sm:$0xff]
    %v186 = vld [vmem:[#allocation7 + $0xe8] sm:$0xff]
    %v187 = vld [vmem:[#allocation7 + $0xf0] sm:$0xff]
    %v188 = vld [vmem:[#allocation7 + $0xf8] sm:$0xff]
    %v189 = vld [vmem:[%s4 + $0x2] sm:$0x3]
    %v191 = vlaneseq
    %v192 = vshrl.u32 %v191, 7
    %v193 = vsub.s32 0, %v192
    %v194 = vrot.slane %v189, %v193
    %v195 = vlaneseq
    %v196 = vshrl.u32 %v195, 7
    %v197 = vsub.s32 1, %v196
    %v198 = vrot.slane %v189, %v197
    %v233 = vunpack.c.l.b16 %v157
    %v234 = vunpack.c.h.b16 %v157
    %v235 = vunpack.c.l.b16 %v158
    %v236 = vunpack.c.h.b16 %v158
    %v237 = vunpack.c.l.b16 %v159
    %v238 = vunpack.c.h.b16 %v159
    %v239 = vunpack.c.l.b16 %v160
    %v240 = vunpack.c.h.b16 %v160
    %v241 = vunpack.c.l.b16 %v161
    %v242 = vunpack.c.h.b16 %v161
    %v243 = vunpack.c.l.b16 %v162
    %v244 = vunpack.c.h.b16 %v162
    %v245 = vunpack.c.l.b16 %v163
    %v246 = vunpack.c.h.b16 %v163
    %v247 = vunpack.c.l.b16 %v164
    %v248 = vunpack.c.h.b16 %v164
    %v249 = vunpack.c.l.b16 %v165
    %v250 = vunpack.c.h.b16 %v165
    %v251 = vunpack.c.l.b16 %v166
    %v252 = vunpack.c.h.b16 %v166
    %v253 = vunpack.c.l.b16 %v167
    %v254 = vunpack.c.h.b16 %v167
    %v255 = vunpack.c.l.b16 %v168
    %v256 = vunpack.c.h.b16 %v168
    %v257 = vunpack.c.l.b16 %v169
    %v258 = vunpack.c.h.b16 %v169
    %v259 = vunpack.c.l.b16 %v170
    %v260 = vunpack.c.h.b16 %v170
    %v261 = vunpack.c.l.b16 %v171
    %v262 = vunpack.c.h.b16 %v171
    %v263 = vunpack.c.l.b16 %v172
    %v264 = vunpack.c.h.b16 %v172
    %v265 = vunpack.c.l.b16 %v173
    %v266 = vunpack.c.h.b16 %v173
    %v267 = vunpack.c.l.b16 %v174
    %v268 = vunpack.c.h.b16 %v174
    %v269 = vunpack.c.l.b16 %v175
    %v270 = vunpack.c.h.b16 %v175
    %v271 = vunpack.c.l.b16 %v176
    %v272 = vunpack.c.h.b16 %v176
    %v273 = vunpack.c.l.b16 %v177
    %v274 = vunpack.c.h.b16 %v177
    %v275 = vunpack.c.l.b16 %v178
    %v276 = vunpack.c.h.b16 %v178
    %v277 = vunpack.c.l.b16 %v179
    %v278 = vunpack.c.h.b16 %v179
    %v279 = vunpack.c.l.b16 %v180
    %v280 = vunpack.c.h.b16 %v180
    %v281 = vunpack.c.l.b16 %v181
    %v282 = vunpack.c.h.b16 %v181
    %v283 = vunpack.c.l.b16 %v182
    %v284 = vunpack.c.h.b16 %v182
    %v285 = vunpack.c.l.b16 %v183
    %v286 = vunpack.c.h.b16 %v183
    %v287 = vunpack.c.l.b16 %v184
    %v288 = vunpack.c.h.b16 %v184
    %v289 = vunpack.c.l.b16 %v185
    %v290 = vunpack.c.h.b16 %v185
    %v291 = vunpack.c.l.b16 %v186
    %v292 = vunpack.c.h.b16 %v186
    %v293 = vunpack.c.l.b16 %v187
    %v294 = vunpack.c.h.b16 %v187
    %v295 = vunpack.c.l.b16 %v188
    %v296 = vunpack.c.h.b16 %v188
    %v297 = vpack.c.b16 %v235, %v233
    %v298 = vpack.c.b16 %v236, %v234
    %v299 = vpack.c.b16 %v239, %v237
    %v300 = vpack.c.b16 %v240, %v238
    %v301 = vpack.c.b16 %v243, %v241
    %v302 = vpack.c.b16 %v244, %v242
    %v303 = vpack.c.b16 %v247, %v245
    %v304 = vpack.c.b16 %v248, %v246
    %v305 = vpack.c.b16 %v251, %v249
    %v306 = vpack.c.b16 %v252, %v250
    %v307 = vpack.c.b16 %v255, %v253
    %v308 = vpack.c.b16 %v256, %v254
    %v309 = vpack.c.b16 %v259, %v257
    %v310 = vpack.c.b16 %v260, %v258
    %v311 = vpack.c.b16 %v263, %v261
    %v312 = vpack.c.b16 %v264, %v262
    %v313 = vpack.c.b16 %v267, %v265
    %v314 = vpack.c.b16 %v268, %v266
    %v315 = vpack.c.b16 %v271, %v269
    %v316 = vpack.c.b16 %v272, %v270
    %v317 = vpack.c.b16 %v275, %v273
    %v318 = vpack.c.b16 %v276, %v274
    %v319 = vpack.c.b16 %v279, %v277
    %v320 = vpack.c.b16 %v280, %v278
    %v321 = vpack.c.b16 %v283, %v281
    %v322 = vpack.c.b16 %v284, %v282
    %v323 = vpack.c.b16 %v287, %v285
    %v324 = vpack.c.b16 %v288, %v286
    %v325 = vpack.c.b16 %v291, %v289
    %v326 = vpack.c.b16 %v292, %v290
    %v327 = vpack.c.b16 %v295, %v293
    %v328 = vpack.c.b16 %v296, %v294
    %361 = vmatprep.subr.bf16.mxu0 %v312
    %362 = vmatpush1.bf16.msra.mxu0 %v311
    %363 = vmatprep.subr.bf16.mxu0 %v310
    %364 = vmatpush1.bf16.msra.mxu0 %v309
    %365 = vmatprep.subr.bf16.mxu0 %v308
    %366 = vmatpush1.bf16.msra.mxu0 %v307
    %367 = vmatprep.subr.bf16.mxu0 %v306
    %368 = vmatpush1.bf16.msra.mxu0 %v305
    %369 = vmatprep.subr.bf16.mxu0 %v304
    %370 = vmatpush1.bf16.msra.mxu0 %v303
    %371 = vmatprep.subr.bf16.mxu0 %v302
    %372 = vmatpush1.bf16.msra.mxu0 %v301
    %373 = vmatprep.subr.bf16.mxu0 %v300
    %374 = vmatpush1.bf16.msra.mxu0 %v299
    %375 = vmatprep.subr.bf16.mxu0 %v298
    %376 = vmatpush1.bf16.msra.mxu0 %v297
    %377 = vmatprep.subr.bf16.mxu0 %v328
    %378 = vmatpush2.bf16.msra.mxu0 %v327
    %379 = vmatprep.subr.bf16.mxu0 %v326
    %380 = vmatpush2.bf16.msra.mxu0 %v325
    %381 = vmatprep.subr.bf16.mxu0 %v324
    %382 = vmatpush2.bf16.msra.mxu0 %v323
    %383 = vmatprep.subr.bf16.mxu0 %v322
    %384 = vmatpush2.bf16.msra.mxu0 %v321
    %385 = vmatprep.subr.bf16.mxu0 %v320
    %386 = vmatpush2.bf16.msra.mxu0 %v319
    %387 = vmatprep.subr.bf16.mxu0 %v318
    %388 = vmatpush2.bf16.msra.mxu0 %v317
    %389 = vmatprep.subr.bf16.mxu0 %v316
    %390 = vmatpush2.bf16.msra.mxu0 %v315
    %391 = vmatprep.subr.bf16.mxu0 %v314
    %392 = vmatpush2.bf16.msra.mxu0 %v313
    %393 = vmatprep.mubr.bf16.mxu0 %v156
    %394 = vmatmul.mubr.bf16.gmra.mxu0 %v155
    %v395 = vpop.f32.mrf.mxu0
    %v396 = vadd.f32 %v194, %v395
    %v397 = vpop.f32.mrf.mxu0
    %v398 = vadd.f32 %v198, %v397
    %v399 = vpop.f32.mrf.mxu0
    %v400 = vadd.f32 %v194, %v399
    %v401 = vpop.f32.mrf.mxu0
    %v402 = vadd.f32 %v198, %v401
    %403 = vdwg.mxu0
    %v404 = vmax.f32 %v396, 0.0
    %v405 = vmax.f32 %v398, 0.0
    %v406 = vmax.f32 %v400, 0.0
    %v407 = vmax.f32 %v402, 0.0
    %v408 = vpack.c.bf16 %v406, %v404
    %v409 = vpack.c.bf16 %v407, %v405
    %v410 = vld [vmem:[#allocation8] sm:$0xf]
    %v411 = vld [vmem:[#allocation8 + $0x4] sm:$0xf]
    %v412 = vld [vmem:[#allocation8 + $0x8] sm:$0xf]
    %v413 = vld [vmem:[#allocation8 + $0xc] sm:$0xf]
    %v414 = vld [vmem:[#allocation8 + $0x10] sm:$0xf]
    %v415 = vld [vmem:[#allocation8 + $0x14] sm:$0xf]
    %v416 = vld [vmem:[#allocation8 + $0x18] sm:$0xf]
    %v417 = vld [vmem:[#allocation8 + $0x1c] sm:$0xf]
    %v418 = vld [vmem:[#allocation8 + $0x20] sm:$0xf]
    %v419 = vld [vmem:[#allocation8 + $0x24] sm:$0xf]
    %v420 = vld [vmem:[#allocation8 + $0x28] sm:$0xf]
    %v421 = vld [vmem:[#allocation8 + $0x2c] sm:$0xf]
    %v422 = vld [vmem:[#allocation8 + $0x30] sm:$0xf]
    %v423 = vld [vmem:[#allocation8 + $0x34] sm:$0xf]
    %v424 = vld [vmem:[#allocation8 + $0x38] sm:$0xf]
    %v425 = vld [vmem:[#allocation8 + $0x3c] sm:$0xf]
    %v426 = vld [vmem:[#allocation8 + $0x40] sm:$0xf]
    %v427 = vld [vmem:[#allocation8 + $0x44] sm:$0xf]
    %v428 = vld [vmem:[#allocation8 + $0x48] sm:$0xf]
    %v429 = vld [vmem:[#allocation8 + $0x4c] sm:$0xf]
    %v430 = vld [vmem:[#allocation8 + $0x50] sm:$0xf]
    %v431 = vld [vmem:[#allocation8 + $0x54] sm:$0xf]
    %v432 = vld [vmem:[#allocation8 + $0x58] sm:$0xf]
    %v433 = vld [vmem:[#allocation8 + $0x5c] sm:$0xf]
    %v434 = vld [vmem:[#allocation8 + $0x60] sm:$0xf]
    %v435 = vld [vmem:[#allocation8 + $0x64] sm:$0xf]
    %v436 = vld [vmem:[#allocation8 + $0x68] sm:$0xf]
    %v437 = vld [vmem:[#allocation8 + $0x6c] sm:$0xf]
    %v438 = vld [vmem:[#allocation8 + $0x70] sm:$0xf]
    %v439 = vld [vmem:[#allocation8 + $0x74] sm:$0xf]
    %v440 = vld [vmem:[#allocation8 + $0x78] sm:$0xf]
    %v441 = vld [vmem:[#allocation8 + $0x7c] sm:$0xf]
    %v442 = vld [vmem:[%s4 + $0x4] sm:$0x1]
    %v444 = vlaneseq
    %v445 = vshrl.u32 %v444, 7
    %v446 = vsub.s32 0, %v445
    %v447 = vrot.slane %v442, %v446
    %v481 = vunpack.c.l.b16 %v410
    %v482 = vunpack.c.l.b16 %v411
    %v483 = vunpack.c.l.b16 %v412
    %v484 = vunpack.c.l.b16 %v413
    %v485 = vunpack.c.l.b16 %v414
    %v486 = vunpack.c.l.b16 %v415
    %v487 = vunpack.c.l.b16 %v416
    %v488 = vunpack.c.l.b16 %v417
    %v489 = vunpack.c.l.b16 %v418
    %v490 = vunpack.c.l.b16 %v419
    %v491 = vunpack.c.l.b16 %v420
    %v492 = vunpack.c.l.b16 %v421
    %v493 = vunpack.c.l.b16 %v422
    %v494 = vunpack.c.l.b16 %v423
    %v495 = vunpack.c.l.b16 %v424
    %v496 = vunpack.c.l.b16 %v425
    %v497 = vunpack.c.l.b16 %v426
    %v498 = vunpack.c.l.b16 %v427
    %v499 = vunpack.c.l.b16 %v428
    %v500 = vunpack.c.l.b16 %v429
    %v501 = vunpack.c.l.b16 %v430
    %v502 = vunpack.c.l.b16 %v431
    %v503 = vunpack.c.l.b16 %v432
    %v504 = vunpack.c.l.b16 %v433
    %v505 = vunpack.c.l.b16 %v434
    %v506 = vunpack.c.l.b16 %v435
    %v507 = vunpack.c.l.b16 %v436
    %v508 = vunpack.c.l.b16 %v437
    %v509 = vunpack.c.l.b16 %v438
    %v510 = vunpack.c.l.b16 %v439
    %v511 = vunpack.c.l.b16 %v440
    %v512 = vunpack.c.l.b16 %v441
    %v513 = vpack.c.b16 %v482, %v481
    %v514 = vpack.c.b16 %v484, %v483
    %v515 = vpack.c.b16 %v486, %v485
    %v516 = vpack.c.b16 %v488, %v487
    %v517 = vpack.c.b16 %v490, %v489
    %v518 = vpack.c.b16 %v492, %v491
    %v519 = vpack.c.b16 %v494, %v493
    %v520 = vpack.c.b16 %v496, %v495
    %v521 = vpack.c.b16 %v498, %v497
    %v522 = vpack.c.b16 %v500, %v499
    %v523 = vpack.c.b16 %v502, %v501
    %v524 = vpack.c.b16 %v504, %v503
    %v525 = vpack.c.b16 %v506, %v505
    %v526 = vpack.c.b16 %v508, %v507
    %v527 = vpack.c.b16 %v510, %v509
    %v528 = vpack.c.b16 %v512, %v511
    %545 = vmatprep.subr.bf16.mxu0 0
    %546 = vmatpush1.bf16.msra.mxu0 %v520
    %547 = vmatprep.subr.bf16.mxu0 0
    %548 = vmatpush1.bf16.msra.mxu0 %v519
    %549 = vmatprep.subr.bf16.mxu0 0
    %550 = vmatpush1.bf16.msra.mxu0 %v518
    %551 = vmatprep.subr.bf16.mxu0 0
    %552 = vmatpush1.bf16.msra.mxu0 %v517
    %553 = vmatprep.subr.bf16.mxu0 0
    %554 = vmatpush1.bf16.msra.mxu0 %v516
    %555 = vmatprep.subr.bf16.mxu0 0
    %556 = vmatpush1.bf16.msra.mxu0 %v515
    %557 = vmatprep.subr.bf16.mxu0 0
    %558 = vmatpush1.bf16.msra.mxu0 %v514
    %559 = vmatprep.subr.bf16.mxu0 0
    %560 = vmatpush1.bf16.msra.mxu0 %v513
    %561 = vmatprep.subr.bf16.mxu0 0
    %562 = vmatpush2.bf16.msra.mxu0 %v528
    %563 = vmatprep.subr.bf16.mxu0 0
    %564 = vmatpush2.bf16.msra.mxu0 %v527
    %565 = vmatprep.subr.bf16.mxu0 0
    %566 = vmatpush2.bf16.msra.mxu0 %v526
    %567 = vmatprep.subr.bf16.mxu0 0
    %568 = vmatpush2.bf16.msra.mxu0 %v525
    %569 = vmatprep.subr.bf16.mxu0 0
    %570 = vmatpush2.bf16.msra.mxu0 %v524
    %571 = vmatprep.subr.bf16.mxu0 0
    %572 = vmatpush2.bf16.msra.mxu0 %v523
    %573 = vmatprep.subr.bf16.mxu0 0
    %574 = vmatpush2.bf16.msra.mxu0 %v522
    %575 = vmatprep.subr.bf16.mxu0 0
    %576 = vmatpush2.bf16.msra.mxu0 %v521
    %577 = vmatprep.mubr.bf16.mxu0 %v409
    %578 = vmatmul.mubr.bf16.gmra.mxu0 %v408
    %v579 = vpop.f32.mrf.mxu0
    %v580 = vadd.f32 %v447, %v579
    %v581 = vpop.f32.mrf.mxu0
    %v582 = vpop.f32.mrf.mxu0
    %v583 = vadd.f32 %v447, %v582
    %v584 = vpop.f32.mrf.mxu0
    %585 = vdwg.mxu0
    %v586 = vtanh.pop %v580
    %v587 = vtanh.pop %v583
    %588 = vst [vmem:[#allocation10] sm:$0xff] %v586
    %589 = vst [vmem:[#allocation10 + $0x8] sm:$0xff] %v587
    // Predicated region
    $region38: #{tpu_custom_call.1} parent=1 // pred_check
      _
    $region39: #{tpu_custom_call.1} parent=1 // pred_check_branch
      %591 = sbr.rel (0) target = $region41
    $region40: #{tpu_custom_call.1} parent=1 // pred_region
      %s593 = ssub.s32 256, 256
      %594 = vsyncadd [#allocation4], %s593
      %s595 = sshll.u32 [#allocation10], 4
      %s596 = int_to_ptr.vmem [resolvable:$true] %s595
      %601 = dma.vmem_to_hbm [thread:$0]  %s596, 256, %s5, [#allocation4], 128, 128, 8
    $region41: #{tpu_custom_call.1} parent=1 // pred_fallthru
      _
    // Predicated region
    $region42: #{tpu_custom_call.1} parent=1 // pred_check
      _
    $region43: #{tpu_custom_call.1} parent=1 // pred_check_branch
      %603 = sbr.rel (0) target = $region45
    $region44: #{tpu_custom_call.1} parent=1 // pred_region
      %604 = dma.done [#allocation4], 256
    $region45: #{tpu_custom_call.1} parent=1 // pred_fallthru
      _
    %605 = vsyncpa [#allocation3], 1
    %606 = vsyncpa [#allocation6], 1
    %607 = vsyncpa [#allocation9], 1
    %608 = vsyncpa [#allocation4], 1

</llo_original>
